<compile_context>
chip_gen: v6e
topology: v6e:2x2x1
jax: 0.10.0
libtpu: 0.0.40
codegen_flags: <defaults>
</compile_context>

<pallas_src>
import functools

import jax
import jax.numpy as jnp
from jax.experimental import pallas as pl
from jax.experimental.pallas import tpu as pltpu


def _round_up(a, b):
    return -(-a // b) * b


def _unfold_copy_kernel(x_ref, o_ref, *, L, L_out, K, stride, dilation, padding):
    """Copy-only 1-D unfold.

    x_ref : (tm, L)          input row tile (rows = B*C)
    o_ref : (tm, K, L_out)   output row tile; per-column stores are lane-dense
    """
    tm = x_ref.shape[0]
    dt = x_ref.dtype

    # ---- trace-time plan: clipped zero/valid ranges per output column j ----
    # out[:, j, l] = x[l*stride + j*dilation - padding]  (zero if out of range)
    plan = []
    for j in range(K):
        s = j * dilation - padding                      # src index of out lane 0
        n_front = min(L_out, max(0, (-s + stride - 1) // stride))
        l_end = min(L_out, max(n_front, (L - 1 - s) // stride + 1))
        n_valid = l_end - n_front
        src0 = n_front * stride + s                     # first in-range src idx
        plan.append((j, n_front, l_end, n_valid, src0))

    # ---- phase decimation: at most `stride` strided lane reads (not K) ----
    needed_phases = sorted({src0 % stride for (_, _, _, nv, src0) in plan if nv > 0})
    dec = {}
    for p in needed_phases:
        if stride == 1:
            dec[p] = x_ref[...]                          # single load of the tile
        else:
            n_p = (L - p + stride - 1) // stride
            dec[p] = x_ref[:, pl.ds(p, n_p, stride)]     # one strided read / phase

    # ---- per-column stores: valid interior + (rare) zero edges ----
    for (j, n_front, l_end, n_valid, src0) in plan:
        if n_valid > 0:
            p = src0 % stride
            d0 = src0 // stride
            valid = dec[p][:, d0:d0 + n_valid]           # contiguous slice of a phase
            o_ref[:, pl.ds(j, 1), pl.ds(n_front, n_valid)] = valid[:, None, :]
        if n_front > 0:
            o_ref[:, pl.ds(j, 1), pl.ds(0, n_front)] = jnp.zeros((tm, 1, n_front), dt)
        n_back = L_out - l_end
        if n_back > 0:
            o_ref[:, pl.ds(j, 1), pl.ds(l_end, n_back)] = jnp.zeros((tm, 1, n_back), dt)


@functools.partial(jax.jit, static_argnames=("kernel_size", "dilation", "padding", "stride"))
def unfold1d(x, *, kernel_size, dilation=1, padding=0, stride=1):
    """Pallas implementation of Unfold1d.forward.

    x: (B, C, L) -> (B, C * kernel_size, L_out)
    """
    B, C, L = x.shape
    K = kernel_size
    L_out = (L + 2 * padding - dilation * (K - 1) - 1) // stride + 1
    assert L_out > 0, "invalid unfold configuration"

    rows = B * C
    x2 = x.reshape(rows, L)                              # collapse (B, C) into rows

    itemsize = jnp.dtype(x.dtype).itemsize
    # Sublane packing of the dtype (bf16 packs 2 rows / sublane, int8/fp8 pack 4).
    sub = {1: 32, 2: 16}.get(itemsize, 8)

    # Generation-aware tile budget: v5e/v6e have 128 MiB VMEM, v7x 64 MiB per TC.
    try:
        vmem_cap = int(getattr(pltpu.get_tpu_info(), "vmem_capacity_bytes"))
    except Exception:  # conservative fallback (treat as v7x-like)
        vmem_cap = 64 << 20
    budget = (48 << 20) if vmem_cap >= (96 << 20) else (24 << 20)

    # Per-row VMEM footprint at padded layout sizes: double-buffered input and
    # output tiles plus the in-kernel loaded / decimated values.
    L_lanes = _round_up(L, 128)
    O_lanes = _round_up(L_out, 128)
    K_sub = _round_up(K, 8)
    per_row = itemsize * (
        2 * L_lanes                                       # input double buffer
        + 2 * K_sub * O_lanes                             # output double buffer
        + (2 if stride > 1 else 1) * L_lanes              # x value / decimated copies
    )

    if rows <= sub:
        tm = rows                                         # cannot tile rows further
    else:
        tm_budget = max(sub, (budget // per_row) // sub * sub)
        # Aim for >= 4 balanced grid steps so DMA/compute pipelining (and both
        # TensorCores on v7x via the "parallel" axis) stay busy.
        tm_balanced = _round_up(max(1, -(-rows // 4)), sub)
        tm = min(_round_up(rows, sub), tm_budget, tm_balanced)
    grid = (pl.cdiv(rows, tm),)

    kernel = functools.partial(
        _unfold_copy_kernel,
        L=L, L_out=L_out, K=K, stride=stride, dilation=dilation, padding=padding,
    )

    vmem_limit = int(max(16 << 20, min(vmem_cap - (8 << 20), tm * per_row + (4 << 20))))

    out3 = pl.pallas_call(
        kernel,
        out_shape=jax.ShapeDtypeStruct((rows, K, L_out), x.dtype),
        grid_spec=pltpu.PrefetchScalarGridSpec(
            num_scalar_prefetch=0,
            grid=grid,
            in_specs=[pl.BlockSpec((tm, L), lambda r: (r, 0))],
            out_specs=pl.BlockSpec((tm, K, L_out), lambda r: (r, 0, 0)),
        ),
        compiler_params=pltpu.CompilerParams(
            dimension_semantics=("parallel",),
            vmem_limit_bytes=vmem_limit,
        ),
        cost_estimate=pl.CostEstimate(
            flops=0,
            transcendentals=0,
            bytes_accessed=int((rows * L + rows * K * L_out) * itemsize),
        ),
    )(x2)

    # (B*C, K, L_out) -> (B, C*K, L_out): contiguous (free) reshape, matching the
    # grouped one-hot-conv output layout of the PyTorch module.
    return out3.reshape(B, C * K, L_out)


def _reference_unfold1d(x, *, kernel_size, dilation=1, padding=0, stride=1):
    """Pure-JAX reference (direct gather) for correctness checking."""
    B, C, L = x.shape
    L_out = (L + 2 * padding - dilation * (kernel_size - 1) - 1) // stride + 1
    x_pad = jnp.pad(x, ((0, 0), (0, 0), (padding, padding)))
    cols = []
    for j in range(kernel_size):
        start = j * dilation
        sl = x_pad[:, :, start: start + stride * L_out: stride]  # (B, C, L_out)
        cols.append(sl)
    ref = jnp.stack(cols, axis=2)  # (B, C, K, L_out)
    return ref.reshape(B, C * kernel_size, L_out)


if __name__ == "__main__":
    key = jax.random.PRNGKey(0)

    # Module-equivalent config: Unfold1d(in_channels=4, kernel_size=3, ...)
    B, C, L = 2, 4, 16
    x = jax.random.normal(key, (B, C, L), dtype=jnp.float32)

    configs = [
        # padded, unit-stride path (trace-time clipping, front/back zero lanes)
        dict(kernel_size=3, dilation=1, padding=1, stride=1),
        # dilated, no-padding path
        dict(kernel_size=3, dilation=2, padding=0, stride=1),
        # strided + padded path (exercises phase decimation)
        dict(kernel_size=3, dilation=1, padding=2, stride=2),
    ]

    for cfg in configs:
        y = jax.block_until_ready(unfold1d(x, **cfg))
        y_ref = _reference_unfold1d(x, **cfg)
        assert y.shape == y_ref.shape, (cfg, y.shape, y_ref.shape)
        assert jnp.allclose(y, y_ref, atol=1e-6, rtol=1e-6), f"mismatch vs reference: {cfg}"

    print("KERNEL_OK")
</pallas_src>

<mosaic_0001>
module attributes {stable_mosaic.version = 11 : i64} {
  func.func @_unfold_copy_kernel(%arg0: i32, %arg1: memref<8x16xf32, #tpu.memory_space<vmem>>, %arg2: memref<8x3x16xf32, #tpu.memory_space<vmem>>) attributes {dimension_semantics = [#tpu.dimension_semantics<parallel>], iteration_bounds = array<i64: 1>, scalar_prefetch = 0 : i64, scratch_operands = 0 : i64, tpu.core_type = #tpu.core_type<tc>, window_params = [{transform_indices = @transform_0, window_bounds = array<i64: 8, 16>}, {transform_indices = @transform_1, window_bounds = array<i64: 8, 3, 16>}]} {
    %c0 = arith.constant 0 : index
    %c0_0 = arith.constant 0 : index
    %0 = vector.load %arg1[%c0, %c0_0] : memref<8x16xf32, #tpu.memory_space<vmem>>, vector<8x16xf32>
    %1 = vector.extract_strided_slice %0 {offsets = [0, 0], sizes = [8, 15], strides = [1, 1]} : vector<8x16xf32> to vector<8x15xf32>
    %2 = vector.shape_cast %1 : vector<8x15xf32> to vector<8x1x15xf32>
    %c0_1 = arith.constant 0 : index
    %c0_2 = arith.constant 0 : index
    %c1 = arith.constant 1 : index
    %3 = vector.load %arg2[%c0_1, %c0_2, %c1] : memref<8x3x16xf32, #tpu.memory_space<vmem>>, vector<8x1x15xf32>
    tpu.vector_store %arg2[%c0_1, %c0_2, %c1], %2 {strides = array<i32>} : memref<8x3x16xf32, #tpu.memory_space<vmem>>, vector<8x1x15xf32>,
    %cst = arith.constant 0.000000e+00 : f32
    %4 = vector.broadcast %cst : f32 to vector<8x1x1xf32>
    %c0_3 = arith.constant 0 : index
    %c0_4 = arith.constant 0 : index
    %c0_5 = arith.constant 0 : index
    %5 = vector.load %arg2[%c0_3, %c0_4, %c0_5] : memref<8x3x16xf32, #tpu.memory_space<vmem>>, vector<8x1x1xf32>
    tpu.vector_store %arg2[%c0_3, %c0_4, %c0_5], %4 {strides = array<i32>} : memref<8x3x16xf32, #tpu.memory_space<vmem>>, vector<8x1x1xf32>,
    %6 = vector.shape_cast %0 : vector<8x16xf32> to vector<8x1x16xf32>
    %c0_6 = arith.constant 0 : index
    %c1_7 = arith.constant 1 : index
    %c0_8 = arith.constant 0 : index
    %7 = vector.load %arg2[%c0_6, %c1_7, %c0_8] : memref<8x3x16xf32, #tpu.memory_space<vmem>>, vector<8x1x16xf32>
    tpu.vector_store %arg2[%c0_6, %c1_7, %c0_8], %6 {strides = array<i32>} : memref<8x3x16xf32, #tpu.memory_space<vmem>>, vector<8x1x16xf32>,
    %8 = vector.extract_strided_slice %0 {offsets = [0, 1], sizes = [8, 15], strides = [1, 1]} : vector<8x16xf32> to vector<8x15xf32>
    %9 = vector.shape_cast %8 : vector<8x15xf32> to vector<8x1x15xf32>
    %c0_9 = arith.constant 0 : index
    %c2 = arith.constant 2 : index
    %c0_10 = arith.constant 0 : index
    %10 = vector.load %arg2[%c0_9, %c2, %c0_10] : memref<8x3x16xf32, #tpu.memory_space<vmem>>, vector<8x1x15xf32>
    tpu.vector_store %arg2[%c0_9, %c2, %c0_10], %9 {strides = array<i32>} : memref<8x3x16xf32, #tpu.memory_space<vmem>>, vector<8x1x15xf32>,
    %cst_11 = arith.constant 0.000000e+00 : f32
    %11 = vector.broadcast %cst_11 : f32 to vector<8x1x1xf32>
    %c0_12 = arith.constant 0 : index
    %c2_13 = arith.constant 2 : index
    %c15 = arith.constant 15 : index
    %12 = vector.load %arg2[%c0_12, %c2_13, %c15] : memref<8x3x16xf32, #tpu.memory_space<vmem>>, vector<8x1x1xf32>
    tpu.vector_store %arg2[%c0_12, %c2_13, %c15], %11 {strides = array<i32>} : memref<8x3x16xf32, #tpu.memory_space<vmem>>, vector<8x1x1xf32>,
    return
  }
  func.func @transform_0(%arg0: i32) -> (i32, i32) {
    %c0_i32 = arith.constant 0 : i32
    %c0_i32_0 = arith.constant 0 : i32
    return %arg0, %c0_i32 : i32, i32
  }
  func.func @transform_1(%arg0: i32) -> (i32, i32, i32) {
    %c0_i32 = arith.constant 0 : i32
    %c0_i32_0 = arith.constant 0 : i32
    %c0_i32_1 = arith.constant 0 : i32
    return %arg0, %c0_i32, %c0_i32_0 : i32, i32, i32
  }
}

</mosaic_0001>

<llo_original>
// kernel: unfold1d.1
$region0: #{unfold1d.1}
  #allocation0 [shape = 'u32[]', space=smem, size = 0x4, offset = 0x4, fixed_abs, tag = 'smem constant byte address 0x4 - core index']
  #allocation1 [shape = 'u32[144,128]{1,0:T(1,128)}', space=vmem, size = 0x12000, scoped, tag = 'internal scratch']
  %s0 = inlined_call_operand.hbm [shape: f32[8,16], index: 0, kind: input, shape index: {}]
  %s1 = inlined_call_operand.vmem [shape: f32[8,3,16], index: 1, kind: output, shape index: {}]
  %s2 = sld [smem:[#allocation0]]
  $region18: #{unfold1d.1} parent=0
    _
  %s4 = ssub.s32 1, %s2
  %s5 = scalar_select 0, %s4, %s2
  $region1: #{unfold1d.1} parent=0
    #allocation2 [shape = 'u8[4096]{0}', space=vmem, size = 0x1000, scoped, tag = 'input window, operand 0, single buffered']
    #allocation3 [shape = 's32[1]{0}', space=sflag, size = 0x4, scoped, tag = 'scoped memory for unfold1d.1']
    %6 = vsyncpa [#allocation3], 0
    // Predicated region
    $region2: #{unfold1d.1} parent=1 // pred_check
      _
    $region3: #{unfold1d.1} parent=1 // pred_check_branch
      %8 = sbr.rel (0) target = $region5
    $region4: #{unfold1d.1} parent=1 // pred_region
      %s10 = ssub.s32 128, 128
      %11 = vsyncadd [#allocation3], %s10
      %s13 = sshll.u32 [#allocation2], 4
      %s14 = int_to_ptr.vmem [resolvable:$true] %s13
      %16 = dma.hbm_to_vmem [thread:$0]  %s0, 128, %s14, [#allocation3]
    $region5: #{unfold1d.1} parent=1 // pred_fallthru
      _
    // Predicated region
    $region6: #{unfold1d.1} parent=1 // pred_check
      _
    $region7: #{unfold1d.1} parent=1 // pred_check_branch
      %18 = sbr.rel (0) target = $region9
    $region8: #{unfold1d.1} parent=1 // pred_region
      %19 = dma.done [#allocation3], 128
    $region9: #{unfold1d.1} parent=1 // pred_fallthru
      _
    %v20 = vld [vmem:[#allocation2] sm:$0xff]
    %v22 = vcombine.high %v20, %v20
    %v24 = vunpack.c.l.s4 1966171168
    %v25 = vunpack.c.0.s8 %v24
    %v26 = vlaneseq
    %v27 = vshrl.u32 %v26, 7
    %v28 = vsub.s32 %v25, %v27
    %v29 = vrot.slane %v20, %v28
    %v31 = vunpack.c.l.s4 1966171168
    %v32 = vunpack.c.0.s8 %v31
    %v33 = vlaneseq
    %v34 = vshrl.u32 %v33, 7
    %v35 = vsub.s32 %v32, %v34
    %v36 = vrot.slane %v22, %v35
    %v37 = vcombine.high %v29, %v29
    %v38 = vcombine.high %v36, %v36
    %v40 = vunpack.c.l.s4 1966171168
    %v41 = vunpack.c.0.s8 %v40
    %v42 = vlaneseq
    %v43 = vshrl.u32 %v42, 7
    %v44 = vsub.s32 %v41, %v43
    %v45 = vrot.slane %v29, %v44
    %v47 = vunpack.c.l.s4 1966171168
    %v48 = vunpack.c.0.s8 %v47
    %v49 = vlaneseq
    %v50 = vshrl.u32 %v49, 7
    %v51 = vsub.s32 %v48, %v50
    %v52 = vrot.slane %v36, %v51
    %v54 = vunpack.c.l.s4 1966171168
    %v55 = vunpack.c.0.s8 %v54
    %v56 = vlaneseq
    %v57 = vshrl.u32 %v56, 7
    %v58 = vsub.s32 %v55, %v57
    %v59 = vrot.slane %v37, %v58
    %v61 = vunpack.c.l.s4 1966171168
    %v62 = vunpack.c.0.s8 %v61
    %v63 = vlaneseq
    %v64 = vshrl.u32 %v63, 7
    %v65 = vsub.s32 %v62, %v64
    %v66 = vrot.slane %v38, %v65
    %v67 = vcombine.high %v45, %v45
    %v68 = vcombine.high %v52, %v52
    %v69 = vcombine.high %v59, %v59
    %v70 = vcombine.high %v66, %v66
    %v71 = vlaneseq
    %v72 = vshrl.u32 %v71, 7
    %v73 = vsub.s32 0, %v72
    %v74 = vrot.slane %v45, %v73
    %v75 = vlaneseq
    %v76 = vshrl.u32 %v75, 7
    %v77 = vsub.s32 0, %v76
    %v78 = vrot.slane %v59, %v77
    %v79 = vlaneseq
    %v80 = vshrl.u32 %v79, 7
    %v81 = vsub.s32 0, %v80
    %v82 = vrot.slane %v67, %v81
    %v83 = vlaneseq
    %v84 = vshrl.u32 %v83, 7
    %v85 = vsub.s32 0, %v84
    %v86 = vrot.slane %v69, %v85
    %v87 = vlaneseq
    %v88 = vshrl.u32 %v87, 7
    %v89 = vsub.s32 0, %v88
    %v90 = vrot.slane %v52, %v89
    %v91 = vlaneseq
    %v92 = vshrl.u32 %v91, 7
    %v93 = vsub.s32 0, %v92
    %v94 = vrot.slane %v66, %v93
    %v95 = vlaneseq
    %v96 = vshrl.u32 %v95, 7
    %v97 = vsub.s32 0, %v96
    %v98 = vrot.slane %v68, %v97
    %v99 = vlaneseq
    %v100 = vshrl.u32 %v99, 7
    %v101 = vsub.s32 0, %v100
    %v102 = vrot.slane %v70, %v101
    %103 = vrot.lane.b32.xlu0 %v74, 1
    %v104 = vpop.permute.xlu0 %103
    %105 = vrot.lane.b32.xlu0 %v78, 1
    %v106 = vpop.permute.xlu0 %105
    %107 = vrot.lane.b32.xlu0 %v82, 1
    %v108 = vpop.permute.xlu0 %107
    %109 = vrot.lane.b32.xlu0 %v86, 1
    %v110 = vpop.permute.xlu0 %109
    %111 = vrot.lane.b32.xlu0 %v90, 1
    %v112 = vpop.permute.xlu0 %111
    %113 = vrot.lane.b32.xlu0 %v94, 1
    %v114 = vpop.permute.xlu0 %113
    %115 = vrot.lane.b32.xlu0 %v98, 1
    %v116 = vpop.permute.xlu0 %115
    %117 = vrot.lane.b32.xlu0 %v102, 1
    %v118 = vpop.permute.xlu0 %117
    %vm127 = vcmask 122888
    %128 = vst.msk [vmem:[%s1] sm:$0x1] %vm127, %v104
    %129 = vst.msk [vmem:[%s1 + $0x4] sm:$0x1] %vm127, %v106
    %130 = vst.msk [vmem:[%s1 + $0x8] sm:$0x1] %vm127, %v108
    %131 = vst.msk [vmem:[%s1 + $0xc] sm:$0x1] %vm127, %v110
    %132 = vst.msk [vmem:[%s1 + $0x10] sm:$0x1] %vm127, %v112
    %133 = vst.msk [vmem:[%s1 + $0x14] sm:$0x1] %vm127, %v114
    %134 = vst.msk [vmem:[%s1 + $0x18] sm:$0x1] %vm127, %v116
    %135 = vst.msk [vmem:[%s1 + $0x1c] sm:$0x1] %vm127, %v118
    %vm136 = vcmask 0
    %137 = vst.msk [vmem:[%s1] sm:$0x1] %vm136, 0.0
    %138 = vst.msk [vmem:[%s1 + $0x4] sm:$0x1] %vm136, 0.0
    %139 = vst.msk [vmem:[%s1 + $0x8] sm:$0x1] %vm136, 0.0
    %140 = vst.msk [vmem:[%s1 + $0xc] sm:$0x1] %vm136, 0.0
    %141 = vst.msk [vmem:[%s1 + $0x10] sm:$0x1] %vm136, 0.0
    %142 = vst.msk [vmem:[%s1 + $0x14] sm:$0x1] %vm136, 0.0
    %143 = vst.msk [vmem:[%s1 + $0x18] sm:$0x1] %vm136, 0.0
    %144 = vst.msk [vmem:[%s1 + $0x1c] sm:$0x1] %vm136, 0.0
    %vm153 = vcmask 122880
    %154 = vst.msk [vmem:[%s1 + $0x1] sm:$0x1] %vm153, %v45
    %155 = vst.msk [vmem:[%s1 + $0x5] sm:$0x1] %vm153, %v59
    %156 = vst.msk [vmem:[%s1 + $0x9] sm:$0x1] %vm153, %v67
    %157 = vst.msk [vmem:[%s1 + $0xd] sm:$0x1] %vm153, %v69
    %158 = vst.msk [vmem:[%s1 + $0x11] sm:$0x1] %vm153, %v52
    %159 = vst.msk [vmem:[%s1 + $0x15] sm:$0x1] %vm153, %v66
    %160 = vst.msk [vmem:[%s1 + $0x19] sm:$0x1] %vm153, %v68
    %161 = vst.msk [vmem:[%s1 + $0x1d] sm:$0x1] %vm153, %v70
    %162 = vrot.lane.b32.xlu0 %v74, 127
    %v163 = vpop.permute.xlu0 %162
    %164 = vrot.lane.b32.xlu0 %v78, 127
    %v165 = vpop.permute.xlu0 %164
    %166 = vrot.lane.b32.xlu0 %v82, 127
    %v167 = vpop.permute.xlu0 %166
    %168 = vrot.lane.b32.xlu0 %v86, 127
    %v169 = vpop.permute.xlu0 %168
    %170 = vrot.lane.b32.xlu0 %v90, 127
    %v171 = vpop.permute.xlu0 %170
    %172 = vrot.lane.b32.xlu0 %v94, 127
    %v173 = vpop.permute.xlu0 %172
    %174 = vrot.lane.b32.xlu0 %v98, 127
    %v175 = vpop.permute.xlu0 %174
    %176 = vrot.lane.b32.xlu0 %v102, 127
    %v177 = vpop.permute.xlu0 %176
    %vm186 = vcmask 114688
    %187 = vst.msk [vmem:[%s1 + $0x2] sm:$0x1] %vm186, %v163
    %188 = vst.msk [vmem:[%s1 + $0x6] sm:$0x1] %vm186, %v165
    %189 = vst.msk [vmem:[%s1 + $0xa] sm:$0x1] %vm186, %v167
    %190 = vst.msk [vmem:[%s1 + $0xe] sm:$0x1] %vm186, %v169
    %191 = vst.msk [vmem:[%s1 + $0x12] sm:$0x1] %vm186, %v171
    %192 = vst.msk [vmem:[%s1 + $0x16] sm:$0x1] %vm186, %v173
    %193 = vst.msk [vmem:[%s1 + $0x1a] sm:$0x1] %vm186, %v175
    %194 = vst.msk [vmem:[%s1 + $0x1e] sm:$0x1] %vm186, %v177
    %vm195 = vcmask 123000
    %196 = vst.msk [vmem:[%s1 + $0x2] sm:$0x1] %vm195, 0.0
    %197 = vst.msk [vmem:[%s1 + $0x6] sm:$0x1] %vm195, 0.0
    %198 = vst.msk [vmem:[%s1 + $0xa] sm:$0x1] %vm195, 0.0
    %199 = vst.msk [vmem:[%s1 + $0xe] sm:$0x1] %vm195, 0.0
    %200 = vst.msk [vmem:[%s1 + $0x12] sm:$0x1] %vm195, 0.0
    %201 = vst.msk [vmem:[%s1 + $0x16] sm:$0x1] %vm195, 0.0
    %202 = vst.msk [vmem:[%s1 + $0x1a] sm:$0x1] %vm195, 0.0
    %203 = vst.msk [vmem:[%s1 + $0x1e] sm:$0x1] %vm195, 0.0
    // Predicated region
    $region10: #{unfold1d.1} parent=1 // pred_check
      _
    $region11: #{unfold1d.1} parent=1 // pred_check_branch
      %205 = sbr.rel (0) target = $region13
    $region12: #{unfold1d.1} parent=1 // pred_region
      _
    $region13: #{unfold1d.1} parent=1 // pred_fallthru
      _
    // Predicated region
    $region14: #{unfold1d.1} parent=1 // pred_check
      _
    $region15: #{unfold1d.1} parent=1 // pred_check_branch
      %207 = sbr.rel (0) target = $region17
    $region16: #{unfold1d.1} parent=1 // pred_region
      _
    $region17: #{unfold1d.1} parent=1 // pred_fallthru
      _
    %208 = vsyncpa [#allocation3], 1

</llo_original>
